<compile_context>
chip_gen: v6e
topology: v6e:2x2x1
jax: 0.10.0
libtpu: 0.0.40
codegen_flags: <defaults>
</compile_context>

<pallas_src>
import functools

import jax
import jax.numpy as jnp
from jax.experimental import pallas as pl
from jax.experimental.pallas import tpu as pltpu


# ---------------------------------------------------------------------------
# Tiling helper
# ---------------------------------------------------------------------------
def _pick_nc_tile(nc, h, w, h_out, w_out, itemsize, budget_bytes=4 << 20):
    """Largest divisor of nc whose (in + out) block footprint fits the budget.

    Budget is per block; Pallas double-buffers, so peak VMEM is ~2x this,
    comfortably under v7x's 32 MiB default scoped VMEM limit (and far under
    v5e/v6e's 128 MiB).
    """
    # TODO(synk): row-tile H for very large spatial planes (a single plane
    # larger than the budget still yields an oversized block at tile=1).
    per_plane = (h * w + h_out * w_out) * itemsize
    max_tile = max(1, budget_bytes // max(per_plane, 1))
    tile = 1
    for d in range(1, nc + 1):
        if nc % d == 0 and d <= max_tile:
            tile = d
    return tile


# ---------------------------------------------------------------------------
# Primary kernel: crop is performed by a strided DMA (HBM window -> out block).
# ---------------------------------------------------------------------------
def _crop_dma_kernel(x_hbm, o_ref, sem, *, rows, cols, h_out, w_out, nc_tile):
    i = pl.program_id(0)
    nc_start = pl.multiple_of(i * nc_tile, nc_tile)
    src = x_hbm.at[
        pl.ds(nc_start, nc_tile),   # channel-block (leading dim)
        pl.ds(rows, h_out),         # row crop (static offset)
        pl.ds(cols, w_out),         # column crop (static offset)
    ]
    cp = pltpu.make_async_copy(src, o_ref, sem)
    cp.start()
    cp.wait()


def _crop_dma_call(x_flat, rows, cols, h_out, w_out, nc_tile):
    nc, h, w = x_flat.shape
    kernel = functools.partial(
        _crop_dma_kernel,
        rows=rows, cols=cols, h_out=h_out, w_out=w_out, nc_tile=nc_tile,
    )
    return pl.pallas_call(
        kernel,
        out_shape=jax.ShapeDtypeStruct((nc, h_out, w_out), x_flat.dtype),
        grid_spec=pltpu.PrefetchScalarGridSpec(
            num_scalar_prefetch=0,
            grid=(nc // nc_tile,),
            in_specs=[pl.BlockSpec(memory_space=pl.ANY)],  # raw HBM ref, no auto-DMA
            out_specs=pl.BlockSpec((nc_tile, h_out, w_out), lambda i: (i, 0, 0)),
            scratch_shapes=[pltpu.SemaphoreType.DMA(())],
        ),
        compiler_params=pltpu.CompilerParams(
            dimension_semantics=("parallel",),
        ),
    )(x_flat)


# ---------------------------------------------------------------------------
# Fallback kernel: classic BlockSpec pipeline + static in-core slice.
# (Reads the full H*W plane per block; only used if the windowed DMA above
#  fails to lower on this toolchain.)
# ---------------------------------------------------------------------------
def _crop_slice_kernel(x_ref, o_ref, *, rows, cols, h_out, w_out):
    o_ref[...] = x_ref[:, rows:rows + h_out, cols:cols + w_out]


def _crop_slice_call(x_flat, rows, cols, h_out, w_out, nc_tile):
    nc, h, w = x_flat.shape
    kernel = functools.partial(
        _crop_slice_kernel, rows=rows, cols=cols, h_out=h_out, w_out=w_out,
    )
    return pl.pallas_call(
        kernel,
        out_shape=jax.ShapeDtypeStruct((nc, h_out, w_out), x_flat.dtype),
        grid_spec=pltpu.PrefetchScalarGridSpec(
            num_scalar_prefetch=0,
            grid=(nc // nc_tile,),
            in_specs=[pl.BlockSpec((nc_tile, h, w), lambda i: (i, 0, 0))],
            out_specs=pl.BlockSpec((nc_tile, h_out, w_out), lambda i: (i, 0, 0)),
        ),
        compiler_params=pltpu.CompilerParams(
            dimension_semantics=("parallel",),
        ),
    )(x_flat)


# ---------------------------------------------------------------------------
# Wrapper (forward-pass semantics of CropLayer)
# ---------------------------------------------------------------------------
_WINDOW_DMA_STATUS = {"ok": None}   # None = untried, True/False after first attempt


def crop_layer(x, crop_set):
    """JAX/Pallas equivalent of CropLayer(crop_set)(x) for NCHW input x."""
    rows_to_crop = -crop_set[0]
    cols_to_crop = -crop_set[1]
    assert rows_to_crop >= 0
    assert cols_to_crop >= 0

    if rows_to_crop == 0 and cols_to_crop == 0:
        return x

    n, c, h, w = x.shape
    h_out = h - 2 * rows_to_crop if rows_to_crop > 0 else h
    w_out = w - 2 * cols_to_crop if cols_to_crop > 0 else w
    assert h_out > 0 and w_out > 0

    nc = n * c
    x_flat = x.reshape(nc, h, w)
    itemsize = jnp.dtype(x.dtype).itemsize
    nc_tile = _pick_nc_tile(nc, h, w, h_out, w_out, itemsize)

    def _finish(out_flat):
        return out_flat.reshape(n, c, h_out, w_out)

    if _WINDOW_DMA_STATUS["ok"] is not False:
        try:
            out_flat = _crop_dma_call(
                x_flat, rows_to_crop, cols_to_crop, h_out, w_out, nc_tile
            )
            _WINDOW_DMA_STATUS["ok"] = True
            return _finish(out_flat)
        except Exception:
            # Windowed (sub-tile-offset) DMA not supported here; use the
            # guaranteed-lowering BlockSpec path instead.
            _WINDOW_DMA_STATUS["ok"] = False

    return _finish(
        _crop_slice_call(x_flat, rows_to_crop, cols_to_crop, h_out, w_out, nc_tile)
    )


if __name__ == "__main__":
    key = jax.random.PRNGKey(0)
    x = jax.random.normal(key, (2, 4, 16, 16), dtype=jnp.float32)

    # crop_set follows the PyTorch convention (non-positive values), e.g. (-2, -3)
    out = jax.block_until_ready(crop_layer(x, (-2, -3)))
    ref = x[:, :, 2:-2, 3:-3]
    assert out.shape == ref.shape == (2, 4, 12, 10)
    assert jnp.array_equal(out, ref)

    # row-only crop
    out_r = jax.block_until_ready(crop_layer(x, (-1, 0)))
    assert jnp.array_equal(out_r, x[:, :, 1:-1, :])

    # col-only crop
    out_c = jax.block_until_ready(crop_layer(x, (0, -1)))
    assert jnp.array_equal(out_c, x[:, :, :, 1:-1])

    # identity branch
    out_id = crop_layer(x, (0, 0))
    assert jnp.array_equal(out_id, x)

    print("KERNEL_OK")
</pallas_src>

<mosaic_0001>
module attributes {stable_mosaic.version = 11 : i64} {
  func.func @_crop_dma_kernel(%arg0: i32, %arg1: memref<8x16x16xf32, #tpu.memory_space<any>>, %arg2: memref<8x12x10xf32, #tpu.memory_space<vmem>>, %arg3: memref<!tpu.dma_semaphore, #tpu.memory_space<semaphore_mem>>) attributes {dimension_semantics = [#tpu.dimension_semantics<parallel>], iteration_bounds = array<i64: 1>, scalar_prefetch = 0 : i64, scratch_operands = 1 : i64, tpu.core_type = #tpu.core_type<tc>, window_params = [{}, {transform_indices = @transform_1, window_bounds = array<i64: 8, 12, 10>}]} {
    %c8_i32 = arith.constant 8 : i32
    %0 = arith.muli %arg0, %c8_i32 : i32
    %1 = tpu.assume_multiple %0, 8 : i32
    %c2_i32 = arith.constant 2 : i32
    %c3_i32 = arith.constant 3 : i32
    %2 = tpu.memref_slice %arg1[%1, %c2_i32, %c3_i32] : memref<8x16x16xf32, #tpu.memory_space<any>> -> memref<8x12x10xf32, #tpu.memory_space<any>>
    tpu.enqueue_dma source(%2 : memref<8x12x10xf32, #tpu.memory_space<any>>) target(%arg2 : memref<8x12x10xf32, #tpu.memory_space<vmem>>) target_semaphore(%arg3 : memref<!tpu.dma_semaphore, #tpu.memory_space<semaphore_mem>>)
    %c2_i32_0 = arith.constant 2 : i32
    %c3_i32_1 = arith.constant 3 : i32
    %3 = tpu.memref_slice %arg1[%1, %c2_i32_0, %c3_i32_1] : memref<8x16x16xf32, #tpu.memory_space<any>> -> memref<8x12x10xf32, #tpu.memory_space<any>>
    tpu.wait_dma2 semaphore(%arg3 : memref<!tpu.dma_semaphore, #tpu.memory_space<semaphore_mem>>) src(%3 : memref<8x12x10xf32, #tpu.memory_space<any>>) dst(%arg2 : memref<8x12x10xf32, #tpu.memory_space<vmem>>)
    return
  }
  func.func @transform_1(%arg0: i32) -> (i32, i32, i32) {
    %c0_i32 = arith.constant 0 : i32
    %c0_i32_0 = arith.constant 0 : i32
    %c0_i32_1 = arith.constant 0 : i32
    return %arg0, %c0_i32, %c0_i32_0 : i32, i32, i32
  }
}

module attributes {stable_mosaic.version = 11 : i64} {
  func.func @_crop_slice_kernel(%arg0: i32, %arg1: memref<8x16x16xf32, #tpu.memory_space<vmem>>, %arg2: memref<8x12x10xf32, #tpu.memory_space<vmem>>) attributes {dimension_semantics = [#tpu.dimension_semantics<parallel>], iteration_bounds = array<i64: 1>, scalar_prefetch = 0 : i64, scratch_operands = 0 : i64, tpu.core_type = #tpu.core_type<tc>, window_params = [{transform_indices = @transform_0, window_bounds = array<i64: 8, 16, 16>}, {transform_indices = @transform_1, window_bounds = array<i64: 8, 12, 10>}]} {
    %c0 = arith.constant 0 : index
    %c2 = arith.constant 2 : index
    %c3 = arith.constant 3 : index
    %0 = vector.load %arg1[%c0, %c2, %c3] : memref<8x16x16xf32, #tpu.memory_space<vmem>>, vector<8x12x10xf32>
    %c0_0 = arith.constant 0 : index
    %c0_1 = arith.constant 0 : index
    %c0_2 = arith.constant 0 : index
    %1 = vector.load %arg2[%c0_0, %c0_1, %c0_2] : memref<8x12x10xf32, #tpu.memory_space<vmem>>, vector<8x12x10xf32>
    tpu.vector_store %arg2[%c0_0, %c0_1, %c0_2], %0 {strides = array<i32>} : memref<8x12x10xf32, #tpu.memory_space<vmem>>, vector<8x12x10xf32>,
    return
  }
  func.func @transform_0(%arg0: i32) -> (i32, i32, i32) {
    %c0_i32 = arith.constant 0 : i32
    %c0_i32_0 = arith.constant 0 : i32
    %c0_i32_1 = arith.constant 0 : i32
    return %arg0, %c0_i32, %c0_i32_0 : i32, i32, i32
  }
  func.func @transform_1(%arg0: i32) -> (i32, i32, i32) {
    %c0_i32 = arith.constant 0 : i32
    %c0_i32_0 = arith.constant 0 : i32
    %c0_i32_1 = arith.constant 0 : i32
    return %arg0, %c0_i32, %c0_i32_0 : i32, i32, i32
  }
}

</mosaic_0001>

<llo_original>
// kernel: tpu_custom_call.1
$region0: #{tpu_custom_call.1}
  #allocation0 [shape = 'u32[]', space=smem, size = 0x4, offset = 0x4, fixed_abs, tag = 'smem constant byte address 0x4 - core index']
  #allocation1 [shape = 'u32[144,128]{1,0:T(1,128)}', space=vmem, size = 0x12000, scoped, tag = 'internal scratch']
  %s0 = inlined_call_operand.hbm [shape: f32[8,16,16], index: 0, kind: input, shape index: {}]
  %s1 = inlined_call_operand.vmem [shape: f32[8,12,10], index: 1, kind: output, shape index: {}]
  %s2 = sld [smem:[#allocation0]]
  $region18: #{tpu_custom_call.1} parent=0
    _
  %s4 = ssub.s32 1, %s2
  %s5 = scalar_select 0, %s4, %s2
  $region1: #{tpu_custom_call.1} parent=0
    #allocation2 [shape = 'u8[65536]{0}', space=vmem, size = 0x10000, scoped, tag = 'input window, operand 0, single buffered']
    #allocation3 [shape = 's32[1]{0}', space=sflag, size = 0x4, scoped, tag = 'scoped memory for tpu_custom_call.1']
    %6 = vsyncpa [#allocation3], 0
    // Predicated region
    $region2: #{tpu_custom_call.1} parent=1 // pred_check
      _
    $region3: #{tpu_custom_call.1} parent=1 // pred_check_branch
      %8 = sbr.rel (0) target = $region5
    $region4: #{tpu_custom_call.1} parent=1 // pred_region
      %s10 = ssub.s32 2048, 2048
      %11 = vsyncadd [#allocation3], %s10
      %s12 = sshll.u32 [#allocation2], 4
      %s13 = int_to_ptr.vmem [resolvable:$true] %s12
      %18 = dma.hbm_to_vmem [thread:$0]  %s0, 2048, %s13, [#allocation3], 128, 128, 8
    $region5: #{tpu_custom_call.1} parent=1 // pred_fallthru
      _
    // Predicated region
    $region6: #{tpu_custom_call.1} parent=1 // pred_check
      _
    $region7: #{tpu_custom_call.1} parent=1 // pred_check_branch
      %20 = sbr.rel (0) target = $region9
    $region8: #{tpu_custom_call.1} parent=1 // pred_region
      %21 = dma.done [#allocation3], 2048
    $region9: #{tpu_custom_call.1} parent=1 // pred_fallthru
      _
    %v22 = vld [vmem:[#allocation2 + $0x2] sm:$0xff]
    %v23 = vld [vmem:[#allocation2 + $0xa] sm:$0xf]
    %v24 = vld [vmem:[#allocation2 + $0x12] sm:$0xff]
    %v25 = vld [vmem:[#allocation2 + $0x1a] sm:$0xf]
    %v26 = vld [vmem:[#allocation2 + $0x22] sm:$0xff]
    %v27 = vld [vmem:[#allocation2 + $0x2a] sm:$0xf]
    %v28 = vld [vmem:[#allocation2 + $0x32] sm:$0xff]
    %v29 = vld [vmem:[#allocation2 + $0x3a] sm:$0xf]
    %v30 = vld [vmem:[#allocation2 + $0x42] sm:$0xff]
    %v31 = vld [vmem:[#allocation2 + $0x4a] sm:$0xf]
    %v32 = vld [vmem:[#allocation2 + $0x52] sm:$0xff]
    %v33 = vld [vmem:[#allocation2 + $0x5a] sm:$0xf]
    %v34 = vld [vmem:[#allocation2 + $0x62] sm:$0xff]
    %v35 = vld [vmem:[#allocation2 + $0x6a] sm:$0xf]
    %v36 = vld [vmem:[#allocation2 + $0x72] sm:$0xff]
    %v37 = vld [vmem:[#allocation2 + $0x7a] sm:$0xf]
    %54 = vrot.lane.b32.xlu0 %v22, 125
    %v55 = vpop.permute.xlu0 %54
    %56 = vrot.lane.b32.xlu0 %v23, 125
    %v57 = vpop.permute.xlu0 %56
    %58 = vrot.lane.b32.xlu0 %v24, 125
    %v59 = vpop.permute.xlu0 %58
    %60 = vrot.lane.b32.xlu0 %v25, 125
    %v61 = vpop.permute.xlu0 %60
    %62 = vrot.lane.b32.xlu0 %v26, 125
    %v63 = vpop.permute.xlu0 %62
    %64 = vrot.lane.b32.xlu0 %v27, 125
    %v65 = vpop.permute.xlu0 %64
    %66 = vrot.lane.b32.xlu0 %v28, 125
    %v67 = vpop.permute.xlu0 %66
    %68 = vrot.lane.b32.xlu0 %v29, 125
    %v69 = vpop.permute.xlu0 %68
    %70 = vrot.lane.b32.xlu0 %v30, 125
    %v71 = vpop.permute.xlu0 %70
    %72 = vrot.lane.b32.xlu0 %v31, 125
    %v73 = vpop.permute.xlu0 %72
    %74 = vrot.lane.b32.xlu0 %v32, 125
    %v75 = vpop.permute.xlu0 %74
    %76 = vrot.lane.b32.xlu0 %v33, 125
    %v77 = vpop.permute.xlu0 %76
    %78 = vrot.lane.b32.xlu0 %v34, 125
    %v79 = vpop.permute.xlu0 %78
    %80 = vrot.lane.b32.xlu0 %v35, 125
    %v81 = vpop.permute.xlu0 %80
    %82 = vrot.lane.b32.xlu0 %v36, 125
    %v83 = vpop.permute.xlu0 %82
    %84 = vrot.lane.b32.xlu0 %v37, 125
    %v85 = vpop.permute.xlu0 %84
    %vm102 = vcmask 80896
    %103 = vst.msk [vmem:[%s1] sm:$0xff] %vm102, %v55
    %vm104 = vcmask 76800
    %105 = vst.msk [vmem:[%s1 + $0x8] sm:$0xf] %vm104, %v57
    %106 = vst.msk [vmem:[%s1 + $0x10] sm:$0xff] %vm102, %v59
    %107 = vst.msk [vmem:[%s1 + $0x18] sm:$0xf] %vm104, %v61
    %108 = vst.msk [vmem:[%s1 + $0x20] sm:$0xff] %vm102, %v63
    %109 = vst.msk [vmem:[%s1 + $0x28] sm:$0xf] %vm104, %v65
    %110 = vst.msk [vmem:[%s1 + $0x30] sm:$0xff] %vm102, %v67
    %111 = vst.msk [vmem:[%s1 + $0x38] sm:$0xf] %vm104, %v69
    %112 = vst.msk [vmem:[%s1 + $0x40] sm:$0xff] %vm102, %v71
    %113 = vst.msk [vmem:[%s1 + $0x48] sm:$0xf] %vm104, %v73
    %114 = vst.msk [vmem:[%s1 + $0x50] sm:$0xff] %vm102, %v75
    %115 = vst.msk [vmem:[%s1 + $0x58] sm:$0xf] %vm104, %v77
    %116 = vst.msk [vmem:[%s1 + $0x60] sm:$0xff] %vm102, %v79
    %117 = vst.msk [vmem:[%s1 + $0x68] sm:$0xf] %vm104, %v81
    %118 = vst.msk [vmem:[%s1 + $0x70] sm:$0xff] %vm102, %v83
    %119 = vst.msk [vmem:[%s1 + $0x78] sm:$0xf] %vm104, %v85
    // Predicated region
    $region10: #{tpu_custom_call.1} parent=1 // pred_check
      _
    $region11: #{tpu_custom_call.1} parent=1 // pred_check_branch
      %121 = sbr.rel (0) target = $region13
    $region12: #{tpu_custom_call.1} parent=1 // pred_region
      _
    $region13: #{tpu_custom_call.1} parent=1 // pred_fallthru
      _
    // Predicated region
    $region14: #{tpu_custom_call.1} parent=1 // pred_check
      _
    $region15: #{tpu_custom_call.1} parent=1 // pred_check_branch
      %123 = sbr.rel (0) target = $region17
    $region16: #{tpu_custom_call.1} parent=1 // pred_region
      _
    $region17: #{tpu_custom_call.1} parent=1 // pred_fallthru
      _
    %124 = vsyncpa [#allocation3], 1

</llo_original>
